<compile_context>
chip_gen: v7x
topology: tpu7x:2x2x1
jax: 0.10.0
libtpu: 0.0.40
codegen_flags: <defaults>
</compile_context>

<pallas_src>
from typing import Dict, Tuple

import numpy as np
import jax
import jax.numpy as jnp
from jax.experimental import pallas as pl
from jax.experimental.pallas import tpu as pltpu


# ----------------------------------------------------------------------------
# Synthetic synth-chain definition (stand-in for synth_chains_dict /
# synth_constants in the original repo; shapes are what apply_params produces).
# ----------------------------------------------------------------------------
SYNTH_CHAIN = [
    {"index": (0, 0), "operation": "osc"},
    {"index": (0, 1), "operation": "filter"},
    {"index": (0, 2), "operation": "env_adsr"},
    {"index": (1, 0), "operation": None},  # pass-through cell, skipped in forward
]

MODULAR_SYNTH_PARAMS = {
    "osc": ["amp", "freq", "waveform", "active"],
    "filter": ["filter_freq", "filter_type"],
    "env_adsr": ["attack_t", "decay_t", "sustain_level", "release_t"],
}

WAVE_TYPES = 4     # len(synth_constants.wave_type_dict)
FILTER_TYPES = 2   # len(synth_constants.filter_type_dict)
ONE_HOT_FACTOR = 1000.0

SUBLANES = 8
TILE_W = 512                      # fixed lane width of the packed slab (contiguous blocks)
MAX_BLOCK_ROWS = 2048             # (2048, 512) f32 = 4 MiB per block
MIN_SPLIT_ROWS = 512              # >= ~1 MiB slab -> force grid >= 2 (v7x has 2 TCs)
MIN_PALLAS_BYTES = 2 * 1024 * 1024  # below this, XLA's fused sigmoid is faster


def get_key(index: Tuple[int, int], operation: str, parameter: str) -> str:
    return f"{index}" + "_" + operation + "_" + parameter


def _round_up(x: int, m: int) -> int:
    return (x + m - 1) // m * m


# ----------------------------------------------------------------------------
# Pallas kernel: elementwise sigmoid over the packed, contiguous weight slab.
# ----------------------------------------------------------------------------
def _sigmoid_kernel(w_ref, o_ref):
    x = w_ref[...]
    # sigmoid(x) = 0.5 * (tanh(x / 2) + 1): tanh runs on the EUP (idle slot),
    # add/mul on the VPU; no vdiv and no exp overflow for the +/-1000 logits.
    o_ref[...] = 0.5 * (jnp.tanh(0.5 * x) + 1.0)


def _choose_block_rows(rows_needed: int) -> int:
    """Rows per block (multiple of 8, <= MAX_BLOCK_ROWS).  For slabs that are
    big enough to split but still fit one block, pick ~half so the grid has
    >= 2 parallel steps (keeps both v7x TensorCores busy)."""
    rows8 = _round_up(max(rows_needed, 1), SUBLANES)
    if 2 * MIN_SPLIT_ROWS <= rows8 <= MAX_BLOCK_ROWS:
        return _round_up(pl.cdiv(rows8, 2), SUBLANES)
    return min(rows8, MAX_BLOCK_ROWS)


def pallas_sigmoid_slab(slab: jax.Array, block_rows: int) -> jax.Array:
    """slab: (R, TILE_W) float32 with R % block_rows == 0. Returns sigmoid(slab)."""
    R, W = slab.shape
    assert R % SUBLANES == 0 and W % 128 == 0 and R % block_rows == 0
    grid = (R // block_rows,)
    return pl.pallas_call(
        _sigmoid_kernel,
        out_shape=jax.ShapeDtypeStruct((R, W), slab.dtype),
        grid_spec=pl.GridSpec(
            grid=grid,
            in_specs=[pl.BlockSpec((block_rows, W), lambda i: (i, 0))],
            out_specs=pl.BlockSpec((block_rows, W), lambda i: (i, 0)),
        ),
        # NOTE: no input_output_aliases -- the slab is persistent packed state;
        # in-place writes would corrupt the stored weights for the next call.
        compiler_params=pltpu.CompilerParams(
            dimension_semantics=("parallel",),
            # 4 live buffers * <=4 MiB block = <=16 MiB: default scoped VMEM is
            # plenty on v5e/v6e/v7x, so no vmem_limit_bytes override.
        ),
    )(slab)


# ----------------------------------------------------------------------------
# DecoderNetwork equivalent in JAX
# ----------------------------------------------------------------------------
class DecoderNetworkPallas:
    """Decoder-only network: every forward() returns sigmoid(param_head_weight)
    for each (cell, op, param) of the chain, computed in one Pallas kernel over
    a slab that is packed once at apply_params() time."""

    def __init__(self, chain, force_pallas: bool = False):
        self.chain = chain
        self.force_pallas = force_pallas  # demo/testing: always take the Pallas path
        # key -> weight array (the SimpleWeightLayer parameter)
        self.parameters_dict: Dict[str, jax.Array] = {}
        self._fwd = None
        self._slab = None
        self._block_rows = None
        self._keys = None
        self._shapes = None
        self._sizes = None
        self._offsets = None

    # --- parameter initialization (stand-in for apply_params with init dict) ---
    def apply_params(self, key: jax.Array, batch_size: int = 1):
        """Deterministically initialize one SimpleWeightLayer weight per param."""
        for cell in self.chain:
            index = cell.get("index")
            operation = cell.get("operation")
            if operation is None:
                continue
            for param_name in MODULAR_SYNTH_PARAMS[operation]:
                key, sub = jax.random.split(key)
                if param_name in ("waveform", "filter_type"):
                    n_classes = WAVE_TYPES if param_name == "waveform" else FILTER_TYPES
                    cls = jax.random.randint(sub, (batch_size,), 0, n_classes)
                    w = jax.nn.one_hot(cls, n_classes, dtype=jnp.float32) * ONE_HOT_FACTOR
                elif param_name in ("active", "fm_active"):
                    flips = jax.random.bernoulli(sub, 0.5, (batch_size,))
                    w = jnp.where(flips, 1.0, -1.0).astype(jnp.float32)
                    w = w[None, :]  # ndim==1 -> unsqueeze(0), like SimpleWeightLayer
                else:
                    w = jax.random.uniform(sub, (batch_size,), dtype=jnp.float32)
                    w = w[None, :]  # ndim==1 -> unsqueeze(0)
                self.parameters_dict[get_key(index, operation, param_name)] = w
        self._repack()

    # --- pack all weights into the (rows, TILE_W) slab ONCE ---
    def _repack(self):
        keys = list(self.parameters_dict.keys())
        shapes = [tuple(self.parameters_dict[k].shape) for k in keys]
        sizes = [int(np.prod(s)) for s in shapes]
        offsets = np.concatenate(([0], np.cumsum(sizes)[:-1])).astype(np.int64).tolist()
        total = int(sum(sizes))

        rows_needed = max(1, pl.cdiv(total, TILE_W))
        block_rows = _choose_block_rows(rows_needed)
        rows = _round_up(rows_needed, block_rows)
        padded = rows * TILE_W

        flat = jnp.concatenate(
            [self.parameters_dict[k].reshape(-1).astype(jnp.float32) for k in keys]
        )
        flat = jnp.pad(flat, (0, padded - total))
        self._slab = flat.reshape(rows, TILE_W)  # packed once; reused every forward
        self._block_rows = block_rows
        self._keys, self._shapes, self._sizes, self._offsets = keys, shapes, sizes, offsets
        self._fwd = None  # structure changed; rebuild jitted forward

    # --- build the single jitted forward over the persistent slab ---
    def _build_forward(self):
        slab_bytes = int(self._slab.size) * 4
        use_pallas = self.force_pallas or slab_bytes >= MIN_PALLAS_BYTES
        block_rows = self._block_rows

        def fwd(slab):
            if use_pallas:
                out = pallas_sigmoid_slab(slab, block_rows)
            else:
                # Small-slab path: a pallas_call's fixed dispatch + per-step
                # overhead dominates at KiB scale; XLA's fused sigmoid wins.
                out = jax.nn.sigmoid(slab)
            return out.reshape(-1)

        return jax.jit(fwd)

    def forward(self):
        if self._fwd is None:
            self._fwd = self._build_forward()
        out_flat = self._fwd(self._slab)

        # Thin static-slice views per parameter (no re-pack, no extra kernel work).
        vals = {
            k: out_flat[off: off + sz].reshape(shp)
            for k, off, sz, shp in zip(self._keys, self._offsets, self._sizes, self._shapes)
        }

        output_dic = {}
        for cell in self.chain:
            index = cell.get("index")
            operation = cell.get("operation")
            if operation is None:
                continue
            param_vals = {p: vals[get_key(index, operation, p)]
                          for p in MODULAR_SYNTH_PARAMS[operation]}
            output_dic[index] = {"operation": operation, "parameters": param_vals}
        return output_dic

    # TODO(synk): apply_params_partial / freeze_params are host-side parameter
    # bookkeeping with no kernel work; they would just update parameters_dict
    # and call _repack().


# ----------------------------------------------------------------------------
if __name__ == "__main__":
    batch_size = 2
    # force_pallas=True so the Pallas kernel path is compiled and exercised even
    # though this example slab is tiny (production would take the XLA-sigmoid gate).
    net = DecoderNetworkPallas(SYNTH_CHAIN, force_pallas=True)
    net.apply_params(jax.random.PRNGKey(0), batch_size=batch_size)

    out = net.forward()
    out = jax.block_until_ready(out)

    # Correctness check vs. pure-JAX reference (sigmoid of each stored weight).
    ok = True
    for cell in SYNTH_CHAIN:
        index, op = cell.get("index"), cell.get("operation")
        if op is None:
            continue
        for p in MODULAR_SYNTH_PARAMS[op]:
            w = net.parameters_dict[get_key(index, op, p)]
            ref = jax.nn.sigmoid(w)
            got = out[index]["parameters"][p]
            if got.shape != w.shape or not np.allclose(np.asarray(got), np.asarray(ref),
                                                       rtol=1e-5, atol=1e-6):
                ok = False

    # Second forward to confirm the persistent slab is NOT mutated in place
    # (no sigmoid(sigmoid(w)) regression).
    out2 = jax.block_until_ready(net.forward())
    w0_key = net._keys[0]
    if not np.allclose(np.asarray(out2[SYNTH_CHAIN[0]["index"]]["parameters"]["amp"]),
                       np.asarray(jax.nn.sigmoid(net.parameters_dict[
                           get_key(SYNTH_CHAIN[0]["index"], "osc", "amp")])),
                       rtol=1e-5, atol=1e-6):
        ok = False

    if ok:
        print("KERNEL_OK")
    else:
        print("KERNEL_MISMATCH")
</pallas_src>

<mosaic_0001>
module attributes {stable_mosaic.version = 11 : i64} {
  func.func @_sigmoid_kernel(%arg0: i32, %arg1: memref<8x512xf32, #tpu.memory_space<vmem>>, %arg2: memref<8x512xf32, #tpu.memory_space<vmem>>) attributes {dimension_semantics = [#tpu.dimension_semantics<parallel>], iteration_bounds = array<i64: 1>, scalar_prefetch = 0 : i64, scratch_operands = 0 : i64, tpu.core_type = #tpu.core_type<tc>, window_params = [{transform_indices = @transform_0, window_bounds = array<i64: 8, 512>}, {transform_indices = @transform_1, window_bounds = array<i64: 8, 512>}]} {
    %c0 = arith.constant 0 : index
    %c0_0 = arith.constant 0 : index
    %0 = vector.load %arg1[%c0, %c0_0] : memref<8x512xf32, #tpu.memory_space<vmem>>, vector<8x512xf32>
    %cst = arith.constant 5.000000e-01 : f32
    %1 = vector.broadcast %cst : f32 to vector<8x512xf32>
    %2 = arith.mulf %1, %0 : vector<8x512xf32>
    %3 = math.tanh %2 : vector<8x512xf32>
    %cst_1 = arith.constant 1.000000e+00 : f32
    %4 = vector.broadcast %cst_1 : f32 to vector<8x512xf32>
    %5 = arith.addf %3, %4 : vector<8x512xf32>
    %cst_2 = arith.constant 5.000000e-01 : f32
    %6 = vector.broadcast %cst_2 : f32 to vector<8x512xf32>
    %7 = arith.mulf %6, %5 : vector<8x512xf32>
    %c0_3 = arith.constant 0 : index
    %c0_4 = arith.constant 0 : index
    %8 = vector.load %arg2[%c0_3, %c0_4] : memref<8x512xf32, #tpu.memory_space<vmem>>, vector<8x512xf32>
    tpu.vector_store %arg2[%c0_3, %c0_4], %7 {strides = array<i32>} : memref<8x512xf32, #tpu.memory_space<vmem>>, vector<8x512xf32>,
    return
  }
  func.func @transform_0(%arg0: i32) -> (i32, i32) {
    %c0_i32 = arith.constant 0 : i32
    %c0_i32_0 = arith.constant 0 : i32
    return %arg0, %c0_i32 : i32, i32
  }
  func.func @transform_1(%arg0: i32) -> (i32, i32) {
    %c0_i32 = arith.constant 0 : i32
    %c0_i32_0 = arith.constant 0 : i32
    return %arg0, %c0_i32 : i32, i32
  }
}

</mosaic_0001>

<llo_original>
// kernel: fwd.1
$region0: #{fwd.1}
  #allocation0 [shape = 'u32[]', space=smem, size = 0x4, offset = 0x4, fixed_abs, tag = 'smem constant byte address 0x4 - core index']
  #allocation1 [shape = 'u32[144,128]{1,0:T(1,128)}', space=vmem, size = 0x12000, scoped, tag = 'internal scratch']
  %s0 = inlined_call_operand.hbm [shape: f32[8,512], index: 0, kind: input, shape index: {}]
  %s1 = inlined_call_operand.vmem [shape: f32[8,512], index: 1, kind: output, shape index: {}]
  %s2 = sld [smem:[#allocation0]]
  $region18: #{fwd.1} parent=0
    _
  %s4 = ssub.s32 1, %s2
  %s5 = scalar_select 0, %s4, %s2
  $region1: #{fwd.1} parent=0
    #allocation2 [shape = 'u8[16384]{0}', space=vmem, size = 0x4000, scoped, tag = 'input window, operand 0, single buffered']
    #allocation3 [shape = 's32[1]{0}', space=sflag, size = 0x4, scoped, tag = 'scoped memory for fwd.1']
    %6 = vsyncpa [#allocation3], 0
    // Predicated region
    $region2: #{fwd.1} parent=1 // pred_check
      _
    $region3: #{fwd.1} parent=1 // pred_check_branch
      %8 = sbr.rel (0) target = $region5
    $region4: #{fwd.1} parent=1 // pred_region
      %s10 = ssub.s32 512, 512
      %11 = vsyncadd [#allocation3], %s10
      %s13 = sshll.u32 [#allocation2], 4
      %s14 = int_to_ptr.vmem [resolvable:$true] %s13
      %16 = dma.hbm_to_vmem [thread:$0]  %s0, 512, %s14, [#allocation3]
    $region5: #{fwd.1} parent=1 // pred_fallthru
      _
    // Predicated region
    $region6: #{fwd.1} parent=1 // pred_check
      _
    $region7: #{fwd.1} parent=1 // pred_check_branch
      %18 = sbr.rel (0) target = $region9
    $region8: #{fwd.1} parent=1 // pred_region
      %19 = dma.done [#allocation3], 512
    $region9: #{fwd.1} parent=1 // pred_fallthru
      _
    %v20 = vld [vmem:[#allocation2] sm:$0xff]
    %v21 = vld [vmem:[#allocation2 + $0x8] sm:$0xff]
    %v22 = vld [vmem:[#allocation2 + $0x10] sm:$0xff]
    %v23 = vld [vmem:[#allocation2 + $0x18] sm:$0xff]
    %v24 = vmul.f32 %v20, 0.5
    %v25 = vmul.f32 %v21, 0.5
    %v26 = vmul.f32 %v22, 0.5
    %v27 = vmul.f32 %v23, 0.5
    %v28 = vtanh.pop %v24
    %v29 = vtanh.pop %v25
    %v30 = vtanh.pop %v26
    %v31 = vtanh.pop %v27
    %v32 = vadd.f32 %v28, 1.0
    %v33 = vadd.f32 %v29, 1.0
    %v34 = vadd.f32 %v30, 1.0
    %v35 = vadd.f32 %v31, 1.0
    %v36 = vmul.f32 %v32, 0.5
    %v37 = vmul.f32 %v33, 0.5
    %v38 = vmul.f32 %v34, 0.5
    %v39 = vmul.f32 %v35, 0.5
    %40 = vst [vmem:[%s1] sm:$0xff] %v36
    %41 = vst [vmem:[%s1 + $0x8] sm:$0xff] %v37
    %42 = vst [vmem:[%s1 + $0x10] sm:$0xff] %v38
    %43 = vst [vmem:[%s1 + $0x18] sm:$0xff] %v39
    // Predicated region
    $region10: #{fwd.1} parent=1 // pred_check
      _
    $region11: #{fwd.1} parent=1 // pred_check_branch
      %45 = sbr.rel (0) target = $region13
    $region12: #{fwd.1} parent=1 // pred_region
      _
    $region13: #{fwd.1} parent=1 // pred_fallthru
      _
    // Predicated region
    $region14: #{fwd.1} parent=1 // pred_check
      _
    $region15: #{fwd.1} parent=1 // pred_check_branch
      %47 = sbr.rel (0) target = $region17
    $region16: #{fwd.1} parent=1 // pred_region
      _
    $region17: #{fwd.1} parent=1 // pred_fallthru
      _
    %48 = vsyncpa [#allocation3], 1

</llo_original>
